<compile_context>
chip_gen: v7x
topology: tpu7x:2x2x1
jax: 0.10.0
libtpu: 0.0.40
codegen_flags: <defaults>
</compile_context>

<pallas_src>
import jax
import jax.numpy as jnp
from jax.experimental import pallas as pl
from jax.experimental.pallas import tpu as pltpu


def _round_up(n, m):
    return ((n + m - 1) // m) * m


def _alpaca_kernel(x_ref, w1_ref, b1_ref, w2_ref, b2_ref, w3_ref, b3_ref,
                   q_ref, linv_ref, mu_ref, sigf_ref):
    # ---- encoder MLP over a (TB, x_dim) tile -> phi (TB, phi_dim) ----
    x = x_ref[...]
    h = jnp.tanh(jnp.dot(x, w1_ref[...],
                         preferred_element_type=jnp.float32) + b1_ref[...])
    h = jnp.tanh(jnp.dot(h, w2_ref[...],
                         preferred_element_type=jnp.float32) + b2_ref[...])
    phi = (jnp.dot(h, w3_ref[...],
                   preferred_element_type=jnp.float32) + b3_ref[...])  # (TB, phi)

    if linv_ref.ndim == 3:
        # Per-sample posterior params: Linv (TB, phi, phi), Q (TB, phi, y).
        # Broadcast-multiply + reduce keeps all 128 lanes busy across the TB
        # tile (vs. a serial loop of M=1 MXU matvecs for a batched matmul).
        linv = linv_ref[...]
        q = q_ref[...]
        phi_linv = jnp.sum(phi[:, :, None] * linv, axis=1)       # (TB, phi)
        mu = jnp.sum(phi_linv[:, :, None] * q, axis=1)           # (TB, y)
    else:
        # Batch-shared posterior params: Linv (phi, phi), Q (phi, y).
        # These stay VMEM-resident across all grid steps (index_map -> (0,0)).
        phi_linv = jnp.dot(phi, linv_ref[...],
                           preferred_element_type=jnp.float32)   # (TB, phi)
        mu = jnp.dot(phi_linv, q_ref[...],
                     preferred_element_type=jnp.float32)         # (TB, y)

    # sigfactor = 1 + phi^T Linv phi  (per sample)
    sigf = 1.0 + jnp.sum(phi_linv * phi, axis=-1, keepdims=True)  # (TB, 1)

    mu_ref[...] = mu
    sigf_ref[...] = sigf


def alpaca_forward(x, posterior_params, enc_params, log_sig_eps,
                   *, tb=None, vmem_limit_bytes=None):
    """Pallas implementation of ALPaCA.forward.

    x: (B, x_dim) float32
    posterior_params: (Q, Linv) with either
        Q (B, phi, y), Linv (B, phi, phi)   -- per-sample posterior, or
        Q (phi, y),    Linv (phi, phi)      -- batch-shared posterior
    enc_params: (w1, b1, w2, b2, w3, b3)
    log_sig_eps: (y_dim,)
    returns: mu (B, y_dim), invsig (B, y_dim, y_dim)
    """
    Q, Linv = posterior_params
    w1, b1, w2, b2, w3, b3 = enc_params
    x = x.astype(jnp.float32)
    B, x_dim = x.shape
    hid = w1.shape[1]
    phi_dim, y_dim = Q.shape[-2], Q.shape[-1]
    shared = (Q.ndim == 2)

    # Batch tile: multiple of 8 (sublane), default up to 128 samples per step.
    if tb is None:
        tb = min(128, _round_up(B, 8))
    tb = max(8, _round_up(tb, 8))
    B_pad = _round_up(B, tb)
    n_tiles = B_pad // tb

    if B_pad != B:
        pad = B_pad - B
        x = jnp.pad(x, ((0, pad), (0, 0)))
        if not shared:
            Q = jnp.pad(Q, ((0, pad), (0, 0), (0, 0)))
            Linv = jnp.pad(Linv, ((0, pad), (0, 0), (0, 0)))

    b1r = b1.reshape(1, hid)
    b2r = b2.reshape(1, hid)
    b3r = b3.reshape(1, phi_dim)

    if shared:
        q_spec = pl.BlockSpec((phi_dim, y_dim), lambda b: (0, 0))
        linv_spec = pl.BlockSpec((phi_dim, phi_dim), lambda b: (0, 0))
    else:
        q_spec = pl.BlockSpec((tb, phi_dim, y_dim), lambda b: (b, 0, 0))
        linv_spec = pl.BlockSpec((tb, phi_dim, phi_dim), lambda b: (b, 0, 0))

    grid_spec = pltpu.PrefetchScalarGridSpec(
        num_scalar_prefetch=0,
        grid=(n_tiles,),
        in_specs=[
            pl.BlockSpec((tb, x_dim), lambda b: (b, 0)),      # x
            pl.BlockSpec((x_dim, hid), lambda b: (0, 0)),     # w1
            pl.BlockSpec((1, hid), lambda b: (0, 0)),         # b1
            pl.BlockSpec((hid, hid), lambda b: (0, 0)),       # w2
            pl.BlockSpec((1, hid), lambda b: (0, 0)),         # b2
            pl.BlockSpec((hid, phi_dim), lambda b: (0, 0)),   # w3
            pl.BlockSpec((1, phi_dim), lambda b: (0, 0)),     # b3
            q_spec,                                           # Q
            linv_spec,                                        # Linv
        ],
        out_specs=[
            pl.BlockSpec((tb, y_dim), lambda b: (b, 0)),      # mu
            pl.BlockSpec((tb, 1), lambda b: (b, 0)),          # sigfactor
        ],
    )

    compiler_kwargs = dict(dimension_semantics=("parallel",))
    if vmem_limit_bytes is not None:
        compiler_kwargs["vmem_limit_bytes"] = vmem_limit_bytes

    mu, sigf = pl.pallas_call(
        _alpaca_kernel,
        out_shape=(
            jax.ShapeDtypeStruct((B_pad, y_dim), jnp.float32),
            jax.ShapeDtypeStruct((B_pad, 1), jnp.float32),
        ),
        grid_spec=grid_spec,
        compiler_params=pltpu.CompilerParams(**compiler_kwargs),
    )(x, w1, b1r, w2, b2r, w3, b3r, Q, Linv)

    mu = mu[:B]
    sigf = sigf[:B, 0]

    # invsig = diag(exp(-logSigEps)) / sigfactor, built outside the kernel
    # (batch-invariant exp evaluated once; no (y, y) masked stores per step).
    inv_sig_eps = jnp.exp(-log_sig_eps)                        # (y,)
    invsig = jnp.diag(inv_sig_eps)[None, :, :] / sigf[:, None, None]
    return mu, invsig


def alpaca_forward_ref(x, posterior_params, enc_params, log_sig_eps):
    """Pure-JAX reference mirroring the PyTorch forward."""
    Q, Linv = posterior_params
    if Q.ndim == 2:
        Q = jnp.broadcast_to(Q, (x.shape[0],) + Q.shape)
        Linv = jnp.broadcast_to(Linv, (x.shape[0],) + Linv.shape)
    w1, b1, w2, b2, w3, b3 = enc_params
    h = jnp.tanh(x @ w1 + b1)
    h = jnp.tanh(h @ w2 + b2)
    phi = h @ w3 + b3                                          # (B, phi)
    K = Linv @ Q                                               # (B, phi, y)
    sigfactor = 1.0 + jnp.einsum('bp,bpq,bq->b', phi, Linv, phi)   # (B,)
    mu = jnp.einsum('bpy,bp->by', K, phi)                      # (B, y)
    inv_sig_eps = jnp.diag(jnp.exp(-log_sig_eps))              # (y, y)
    invsig = inv_sig_eps[None, :, :] / sigfactor[:, None, None]
    return mu, invsig


if __name__ == "__main__":
    # small config consistent with the module
    B, x_dim, hid_dim, phi_dim, y_dim = 4, 8, 32, 32, 8

    key = jax.random.PRNGKey(0)
    k = jax.random.split(key, 8)

    # module parameters (deterministic, in-script)
    sigma_eps = 0.02 * jnp.ones((y_dim,), jnp.float32)         # model.sigma_eps
    log_sig_eps = jnp.log(sigma_eps)                           # logSigEps
    Q_param = jax.random.normal(k[0], (phi_dim, y_dim), jnp.float32)
    L_asym = jax.random.normal(k[1], (phi_dim, phi_dim), jnp.float32)

    # encoder parameters (assumed MLP encoder)
    w1 = 0.1 * jax.random.normal(k[2], (x_dim, hid_dim), jnp.float32)
    b1 = jnp.zeros((hid_dim,), jnp.float32)
    w2 = 0.1 * jax.random.normal(k[3], (hid_dim, hid_dim), jnp.float32)
    b2 = jnp.zeros((hid_dim,), jnp.float32)
    w3 = 0.1 * jax.random.normal(k[4], (hid_dim, phi_dim), jnp.float32)
    b3 = jnp.zeros((phi_dim,), jnp.float32)
    enc_params = (w1, b1, w2, b2, w3, b3)

    # prior params: Q0 = Q, Linv0 = L_asym @ L_asym^T
    Q0_shared = Q_param
    Linv0_shared = L_asym @ L_asym.T

    # per-sample (batched) posterior params, as after recursive_update
    Q0_b = jnp.broadcast_to(Q0_shared, (B, phi_dim, y_dim)).astype(jnp.float32)
    Linv0_b = jnp.broadcast_to(Linv0_shared,
                               (B, phi_dim, phi_dim)).astype(jnp.float32)

    x = jax.random.normal(k[5], (B, x_dim), jnp.float32)

    # --- batched-posterior path ---
    mu_b, invsig_b = alpaca_forward(x, (Q0_b, Linv0_b), enc_params, log_sig_eps)
    mu_b, invsig_b = jax.block_until_ready((mu_b, invsig_b))

    # --- batch-shared-posterior path (Q/Linv VMEM-resident, MXU matmuls) ---
    mu_s, invsig_s = alpaca_forward(x, (Q0_shared, Linv0_shared),
                                    enc_params, log_sig_eps)
    mu_s, invsig_s = jax.block_until_ready((mu_s, invsig_s))

    mu_ref, invsig_ref = alpaca_forward_ref(x, (Q0_b, Linv0_b), enc_params,
                                            log_sig_eps)

    assert mu_b.shape == (B, y_dim) and invsig_b.shape == (B, y_dim, y_dim)
    assert jnp.allclose(mu_b, mu_ref, rtol=1e-4, atol=1e-4)
    assert jnp.allclose(invsig_b, invsig_ref, rtol=1e-4, atol=1e-4)
    assert jnp.allclose(mu_s, mu_ref, rtol=1e-4, atol=1e-4)
    assert jnp.allclose(invsig_s, invsig_ref, rtol=1e-4, atol=1e-4)

    print("KERNEL_OK")
</pallas_src>

<mosaic_0001>
module attributes {stable_mosaic.version = 11 : i64} {
  func.func @_alpaca_kernel(%arg0: i32, %arg1: memref<8x8xf32, #tpu.memory_space<vmem>>, %arg2: memref<8x32xf32, #tpu.memory_space<vmem>>, %arg3: memref<1x32xf32, #tpu.memory_space<vmem>>, %arg4: memref<32x32xf32, #tpu.memory_space<vmem>>, %arg5: memref<1x32xf32, #tpu.memory_space<vmem>>, %arg6: memref<32x32xf32, #tpu.memory_space<vmem>>, %arg7: memref<1x32xf32, #tpu.memory_space<vmem>>, %arg8: memref<8x32x8xf32, #tpu.memory_space<vmem>>, %arg9: memref<8x32x32xf32, #tpu.memory_space<vmem>>, %arg10: memref<8x8xf32, #tpu.memory_space<vmem>>, %arg11: memref<8x1xf32, #tpu.memory_space<vmem>>) attributes {dimension_semantics = [#tpu.dimension_semantics<parallel>], iteration_bounds = array<i64: 1>, scalar_prefetch = 0 : i64, scratch_operands = 0 : i64, tpu.core_type = #tpu.core_type<tc>, window_params = [{transform_indices = @transform_0, window_bounds = array<i64: 8, 8>}, {pipeline_mode = #tpu.pipeline_mode<synchronous>, transform_indices = @transform_1, window_bounds = array<i64: 8, 32>}, {pipeline_mode = #tpu.pipeline_mode<synchronous>, transform_indices = @transform_2, window_bounds = array<i64: 1, 32>}, {pipeline_mode = #tpu.pipeline_mode<synchronous>, transform_indices = @transform_3, window_bounds = array<i64: 32, 32>}, {pipeline_mode = #tpu.pipeline_mode<synchronous>, transform_indices = @transform_4, window_bounds = array<i64: 1, 32>}, {pipeline_mode = #tpu.pipeline_mode<synchronous>, transform_indices = @transform_5, window_bounds = array<i64: 32, 32>}, {pipeline_mode = #tpu.pipeline_mode<synchronous>, transform_indices = @transform_6, window_bounds = array<i64: 1, 32>}, {transform_indices = @transform_7, window_bounds = array<i64: 8, 32, 8>}, {transform_indices = @transform_8, window_bounds = array<i64: 8, 32, 32>}, {transform_indices = @transform_9, window_bounds = array<i64: 8, 8>}, {transform_indices = @transform_10, window_bounds = array<i64: 8, 1>}]} {
    %c0 = arith.constant 0 : index
    %c0_0 = arith.constant 0 : index
    %0 = vector.load %arg1[%c0, %c0_0] : memref<8x8xf32, #tpu.memory_space<vmem>>, vector<8x8xf32>
    %c0_1 = arith.constant 0 : index
    %c0_2 = arith.constant 0 : index
    %1 = vector.load %arg2[%c0_1, %c0_2] : memref<8x32xf32, #tpu.memory_space<vmem>>, vector<8x32xf32>
    %cst = arith.constant dense<0.000000e+00> : vector<8x32xf32>
    %2 = tpu.matmul %0, %1, %cst {dimension_numbers = #tpu.dot_dimension_numbers<[1], [0], [0], [1], [0, 0, 1, 1], [], []>} : vector<8x8xf32>, vector<8x32xf32>, vector<8x32xf32> -> vector<8x32xf32>
    %c0_3 = arith.constant 0 : index
    %c0_4 = arith.constant 0 : index
    %3 = vector.load %arg3[%c0_3, %c0_4] : memref<1x32xf32, #tpu.memory_space<vmem>>, vector<1x32xf32>
    %4 = vector.broadcast %3 : vector<1x32xf32> to vector<8x32xf32>
    %5 = arith.addf %2, %4 : vector<8x32xf32>
    %6 = math.tanh %5 : vector<8x32xf32>
    %c0_5 = arith.constant 0 : index
    %c0_6 = arith.constant 0 : index
    %7 = vector.load %arg4[%c0_5, %c0_6] : memref<32x32xf32, #tpu.memory_space<vmem>>, vector<32x32xf32>
    %cst_7 = arith.constant dense<0.000000e+00> : vector<8x32xf32>
    %8 = tpu.matmul %6, %7, %cst_7 {dimension_numbers = #tpu.dot_dimension_numbers<[1], [0], [0], [1], [0, 0, 1, 1], [], []>} : vector<8x32xf32>, vector<32x32xf32>, vector<8x32xf32> -> vector<8x32xf32>
    %c0_8 = arith.constant 0 : index
    %c0_9 = arith.constant 0 : index
    %9 = vector.load %arg5[%c0_8, %c0_9] : memref<1x32xf32, #tpu.memory_space<vmem>>, vector<1x32xf32>
    %10 = vector.broadcast %9 : vector<1x32xf32> to vector<8x32xf32>
    %11 = arith.addf %8, %10 : vector<8x32xf32>
    %12 = math.tanh %11 : vector<8x32xf32>
    %c0_10 = arith.constant 0 : index
    %c0_11 = arith.constant 0 : index
    %13 = vector.load %arg6[%c0_10, %c0_11] : memref<32x32xf32, #tpu.memory_space<vmem>>, vector<32x32xf32>
    %cst_12 = arith.constant dense<0.000000e+00> : vector<8x32xf32>
    %14 = tpu.matmul %12, %13, %cst_12 {dimension_numbers = #tpu.dot_dimension_numbers<[1], [0], [0], [1], [0, 0, 1, 1], [], []>} : vector<8x32xf32>, vector<32x32xf32>, vector<8x32xf32> -> vector<8x32xf32>
    %c0_13 = arith.constant 0 : index
    %c0_14 = arith.constant 0 : index
    %15 = vector.load %arg7[%c0_13, %c0_14] : memref<1x32xf32, #tpu.memory_space<vmem>>, vector<1x32xf32>
    %16 = vector.broadcast %15 : vector<1x32xf32> to vector<8x32xf32>
    %17 = arith.addf %14, %16 : vector<8x32xf32>
    %c0_15 = arith.constant 0 : index
    %c0_16 = arith.constant 0 : index
    %c0_17 = arith.constant 0 : index
    %18 = vector.load %arg9[%c0_15, %c0_16, %c0_17] : memref<8x32x32xf32, #tpu.memory_space<vmem>>, vector<8x32x32xf32>
    %c0_18 = arith.constant 0 : index
    %c0_19 = arith.constant 0 : index
    %c0_20 = arith.constant 0 : index
    %19 = vector.load %arg8[%c0_18, %c0_19, %c0_20] : memref<8x32x8xf32, #tpu.memory_space<vmem>>, vector<8x32x8xf32>
    %20 = vector.shape_cast %17 : vector<8x32xf32> to vector<8x32x1xf32>
    %21 = vector.broadcast %20 : vector<8x32x1xf32> to vector<8x32x32xf32>
    %22 = arith.mulf %21, %18 : vector<8x32x32xf32>
    %cst_21 = arith.constant dense<0.000000e+00> : vector<8x32xf32>
    %23 = vector.multi_reduction <add>, %22, %cst_21 [1] : vector<8x32x32xf32> to vector<8x32xf32>
    %24 = vector.shape_cast %23 : vector<8x32xf32> to vector<8x32x1xf32>
    %25 = vector.broadcast %24 : vector<8x32x1xf32> to vector<8x32x8xf32>
    %26 = arith.mulf %25, %19 : vector<8x32x8xf32>
    %cst_22 = arith.constant dense<0.000000e+00> : vector<8x8xf32>
    %27 = vector.multi_reduction <add>, %26, %cst_22 [1] : vector<8x32x8xf32> to vector<8x8xf32>
    %28 = arith.mulf %23, %17 : vector<8x32xf32>
    %cst_23 = arith.constant dense<0.000000e+00> : vector<8xf32>
    %29 = vector.multi_reduction <add>, %28, %cst_23 [1] : vector<8x32xf32> to vector<8xf32>
    %30 = vector.shape_cast %29 : vector<8xf32> to vector<8x1xf32>
    %cst_24 = arith.constant 1.000000e+00 : f32
    %31 = vector.broadcast %cst_24 : f32 to vector<8x1xf32>
    %32 = arith.addf %31, %30 : vector<8x1xf32>
    %c0_25 = arith.constant 0 : index
    %c0_26 = arith.constant 0 : index
    %33 = vector.load %arg10[%c0_25, %c0_26] : memref<8x8xf32, #tpu.memory_space<vmem>>, vector<8x8xf32>
    tpu.vector_store %arg10[%c0_25, %c0_26], %27 {strides = array<i32>} : memref<8x8xf32, #tpu.memory_space<vmem>>, vector<8x8xf32>,
    %c0_27 = arith.constant 0 : index
    %c0_28 = arith.constant 0 : index
    %34 = vector.load %arg11[%c0_27, %c0_28] : memref<8x1xf32, #tpu.memory_space<vmem>>, vector<8x1xf32>
    tpu.vector_store %arg11[%c0_27, %c0_28], %32 {strides = array<i32>} : memref<8x1xf32, #tpu.memory_space<vmem>>, vector<8x1xf32>,
    return
  }
  func.func @transform_0(%arg0: i32) -> (i32, i32) {
    %c0_i32 = arith.constant 0 : i32
    %c0_i32_0 = arith.constant 0 : i32
    return %arg0, %c0_i32 : i32, i32
  }
  func.func @transform_1(%arg0: i32) -> (i32, i32) {
    %c0_i32 = arith.constant 0 : i32
    %c0_i32_0 = arith.constant 0 : i32
    %c0_i32_1 = arith.constant 0 : i32
    return %c0_i32, %c0_i32_0 : i32, i32
  }
  func.func @transform_2(%arg0: i32) -> (i32, i32) {
    %c0_i32 = arith.constant 0 : i32
    %c0_i32_0 = arith.constant 0 : i32
    %c0_i32_1 = arith.constant 0 : i32
    return %c0_i32, %c0_i32_0 : i32, i32
  }
  func.func @transform_3(%arg0: i32) -> (i32, i32) {
    %c0_i32 = arith.constant 0 : i32
    %c0_i32_0 = arith.constant 0 : i32
    %c0_i32_1 = arith.constant 0 : i32
    return %c0_i32, %c0_i32_0 : i32, i32
  }
  func.func @transform_4(%arg0: i32) -> (i32, i32) {
    %c0_i32 = arith.constant 0 : i32
    %c0_i32_0 = arith.constant 0 : i32
    %c0_i32_1 = arith.constant 0 : i32
    return %c0_i32, %c0_i32_0 : i32, i32
  }
  func.func @transform_5(%arg0: i32) -> (i32, i32) {
    %c0_i32 = arith.constant 0 : i32
    %c0_i32_0 = arith.constant 0 : i32
    %c0_i32_1 = arith.constant 0 : i32
    return %c0_i32, %c0_i32_0 : i32, i32
  }
  func.func @transform_6(%arg0: i32) -> (i32, i32) {
    %c0_i32 = arith.constant 0 : i32
    %c0_i32_0 = arith.constant 0 : i32
    %c0_i32_1 = arith.constant 0 : i32
    return %c0_i32, %c0_i32_0 : i32, i32
  }
  func.func @transform_7(%arg0: i32) -> (i32, i32, i32) {
    %c0_i32 = arith.constant 0 : i32
    %c0_i32_0 = arith.constant 0 : i32
    %c0_i32_1 = arith.constant 0 : i32
    return %arg0, %c0_i32, %c0_i32_0 : i32, i32, i32
  }
  func.func @transform_8(%arg0: i32) -> (i32, i32, i32) {
    %c0_i32 = arith.constant 0 : i32
    %c0_i32_0 = arith.constant 0 : i32
    %c0_i32_1 = arith.constant 0 : i32
    return %arg0, %c0_i32, %c0_i32_0 : i32, i32, i32
  }
  func.func @transform_9(%arg0: i32) -> (i32, i32) {
    %c0_i32 = arith.constant 0 : i32
    %c0_i32_0 = arith.constant 0 : i32
    return %arg0, %c0_i32 : i32, i32
  }
  func.func @transform_10(%arg0: i32) -> (i32, i32) {
    %c0_i32 = arith.constant 0 : i32
    %c0_i32_0 = arith.constant 0 : i32
    return %arg0, %c0_i32 : i32, i32
  }
}

</mosaic_0001>

<llo_original>
// kernel: tpu_custom_call.1
$region0: #{tpu_custom_call.1}
  #allocation0 [shape = 'u32[]', space=smem, size = 0x4, offset = 0x4, fixed_abs, tag = 'smem constant byte address 0x4 - core index']
  #allocation1 [shape = 'u32[144,128]{1,0:T(1,128)}', space=vmem, size = 0x12000, scoped, tag = 'internal scratch']
  %s0 = inlined_call_operand.vmem [shape: f32[8,8], index: 0, kind: input, shape index: {}]
  %s1 = inlined_call_operand.vmem [shape: f32[8,32], index: 1, kind: input, shape index: {}]
  %s2 = inlined_call_operand.vmem [shape: f32[1,32], index: 2, kind: input, shape index: {}]
  %s3 = inlined_call_operand.vmem [shape: f32[32,32], index: 3, kind: input, shape index: {}]
  %s4 = inlined_call_operand.vmem [shape: f32[1,32], index: 4, kind: input, shape index: {}]
  %s5 = inlined_call_operand.vmem [shape: f32[32,32], index: 5, kind: input, shape index: {}]
  %s6 = inlined_call_operand.vmem [shape: f32[1,32], index: 6, kind: input, shape index: {}]
  %s7 = inlined_call_operand.vmem [shape: f32[8,32,8], index: 7, kind: input, shape index: {}]
  %s8 = inlined_call_operand.vmem [shape: f32[8,32,32], index: 8, kind: input, shape index: {}]
  %s9 = inlined_call_operand.hbm [shape: f32[8,8], index: 9, kind: output, shape index: {0}]
  %s10 = inlined_call_operand.vmem [shape: f32[8,1], index: 10, kind: output, shape index: {1}]
  %11 = xla_tuple %s9, %s10
  %s12 = sld [smem:[#allocation0]]
  $region54: #{tpu_custom_call.1} parent=0
    _
  %s14 = ssub.s32 1, %s12
  %s15 = scalar_select 0, %s14, %s12
  $region1: #{tpu_custom_call.1} parent=0
    #allocation2 [shape = 'u8[4096]{0}', space=vmem, size = 0x1000, scoped, tag = 'output window, operand 0, single buffered']
    #allocation3 [shape = 's32[1]{0}', space=sflag, size = 0x4, scoped, tag = 'scoped memory for tpu_custom_call.1']
    %16 = vsyncpa [#allocation3], 0
    // Predicated region
    $region2: #{tpu_custom_call.1} parent=1 // pred_check
      _
    $region3: #{tpu_custom_call.1} parent=1 // pred_check_branch
      %18 = sbr.rel (0) target = $region5
    $region4: #{tpu_custom_call.1} parent=1 // pred_region
      _
    $region5: #{tpu_custom_call.1} parent=1 // pred_fallthru
      _
    // Predicated region
    $region6: #{tpu_custom_call.1} parent=1 // pred_check
      _
    $region7: #{tpu_custom_call.1} parent=1 // pred_check_branch
      %20 = sbr.rel (0) target = $region9
    $region8: #{tpu_custom_call.1} parent=1 // pred_region
      _
    $region9: #{tpu_custom_call.1} parent=1 // pred_fallthru
      _
    // Predicated region
    $region10: #{tpu_custom_call.1} parent=1 // pred_check
      _
    $region11: #{tpu_custom_call.1} parent=1 // pred_check_branch
      %22 = sbr.rel (0) target = $region13
    $region12: #{tpu_custom_call.1} parent=1 // pred_region
      _
    $region13: #{tpu_custom_call.1} parent=1 // pred_fallthru
      _
    // Predicated region
    $region14: #{tpu_custom_call.1} parent=1 // pred_check
      _
    $region15: #{tpu_custom_call.1} parent=1 // pred_check_branch
      %24 = sbr.rel (0) target = $region17
    $region16: #{tpu_custom_call.1} parent=1 // pred_region
      _
    $region17: #{tpu_custom_call.1} parent=1 // pred_fallthru
      _
    // Predicated region
    $region18: #{tpu_custom_call.1} parent=1 // pred_check
      _
    $region19: #{tpu_custom_call.1} parent=1 // pred_check_branch
      %26 = sbr.rel (0) target = $region21
    $region20: #{tpu_custom_call.1} parent=1 // pred_region
      _
    $region21: #{tpu_custom_call.1} parent=1 // pred_fallthru
      _
    // Predicated region
    $region22: #{tpu_custom_call.1} parent=1 // pred_check
      _
    $region23: #{tpu_custom_call.1} parent=1 // pred_check_branch
      %28 = sbr.rel (0) target = $region25
    $region24: #{tpu_custom_call.1} parent=1 // pred_region
      _
    $region25: #{tpu_custom_call.1} parent=1 // pred_fallthru
      _
    // Predicated region
    $region26: #{tpu_custom_call.1} parent=1 // pred_check
      _
    $region27: #{tpu_custom_call.1} parent=1 // pred_check_branch
      %30 = sbr.rel (0) target = $region29
    $region28: #{tpu_custom_call.1} parent=1 // pred_region
      _
    $region29: #{tpu_custom_call.1} parent=1 // pred_fallthru
      _
    // Predicated region
    $region30: #{tpu_custom_call.1} parent=1 // pred_check
      _
    $region31: #{tpu_custom_call.1} parent=1 // pred_check_branch
      %32 = sbr.rel (0) target = $region33
    $region32: #{tpu_custom_call.1} parent=1 // pred_region
      _
    $region33: #{tpu_custom_call.1} parent=1 // pred_fallthru
      _
    // Predicated region
    $region34: #{tpu_custom_call.1} parent=1 // pred_check
      _
    $region35: #{tpu_custom_call.1} parent=1 // pred_check_branch
      %34 = sbr.rel (0) target = $region37
    $region36: #{tpu_custom_call.1} parent=1 // pred_region
      _
    $region37: #{tpu_custom_call.1} parent=1 // pred_fallthru
      _
    %v35 = vld [vmem:[%s0] sm:$0xff]
    %v36 = vld [vmem:[%s1] sm:$0xff]
    %v37 = vld [vmem:[%s2] sm:$0x1]
    %v39 = vlaneseq
    %v40 = vshrl.u32 %v39, 7
    %v41 = vsub.s32 0, %v40
    %v42 = vrot.slane %v37, %v41
    %vm44 = vcmask 64512
    %v46 = vsel %vm44, %v35, 0
    %48 = vmatprep.subr.mxu0 0.0
    %49 = vmatpush1.msra.mxu0 %v36
    %50 = vmatprep.subr.mxu0 0.0
    %51 = vmatpush1.msra.mxu0 0.0
    %52 = vmatprep.subr.mxu0 0.0
    %53 = vmatpush1.msra.mxu0 0.0
    %54 = vmatprep.subr.mxu0 0.0
    %55 = vmatpush1.msra.mxu0 0.0
    %56 = vmatprep.subr.mxu0 0.0
    %57 = vmatpush1.msra.mxu0 0.0
    %58 = vmatprep.subr.mxu0 0.0
    %59 = vmatpush1.msra.mxu0 0.0
    %60 = vmatprep.subr.mxu0 0.0
    %61 = vmatpush1.msra.mxu0 0.0
    %62 = vmatprep.subr.mxu0 0.0
    %63 = vmatpush1.msra.mxu0 0.0
    %64 = vmatprep.subr.mxu0 0.0
    %65 = vmatpush1.msra.mxu0 0.0
    %66 = vmatprep.subr.mxu0 0.0
    %67 = vmatpush1.msra.mxu0 0.0
    %68 = vmatprep.subr.mxu0 0.0
    %69 = vmatpush1.msra.mxu0 0.0
    %70 = vmatprep.subr.mxu0 0.0
    %71 = vmatpush1.msra.mxu0 0.0
    %72 = vmatprep.subr.mxu0 0.0
    %73 = vmatpush1.msra.mxu0 0.0
    %74 = vmatprep.subr.mxu0 0.0
    %75 = vmatpush1.msra.mxu0 0.0
    %76 = vmatprep.subr.mxu0 0.0
    %77 = vmatpush1.msra.mxu0 0.0
    %78 = vmatprep.subr.mxu0 0.0
    %79 = vmatpush1.msra.mxu0 0.0
    %80 = vmatprep.subr.mxu0 0.0
    %81 = vmatpush1.msra.mxu0 0.0
    %82 = vmatprep.subr.mxu0 0.0
    %83 = vmatpush1.msra.mxu0 0.0
    %84 = vmatprep.subr.mxu0 0.0
    %85 = vmatpush1.msra.mxu0 0.0
    %86 = vmatprep.subr.mxu0 0.0
    %87 = vmatpush1.msra.mxu0 0.0
    %88 = vmatprep.subr.mxu0 0.0
    %89 = vmatpush1.msra.mxu0 0.0
    %90 = vmatprep.subr.mxu0 0.0
    %91 = vmatpush1.msra.mxu0 0.0
    %92 = vmatprep.subr.mxu0 0.0
    %93 = vmatpush1.msra.mxu0 0.0
    %94 = vmatprep.subr.mxu0 0.0
    %95 = vmatpush1.msra.mxu0 0.0
    %96 = vmatprep.subr.mxu0 0.0
    %97 = vmatpush1.msra.mxu0 0.0
    %98 = vmatprep.subr.mxu0 0.0
    %99 = vmatpush1.msra.mxu0 0.0
    %100 = vmatprep.subr.mxu0 0.0
    %101 = vmatpush1.msra.mxu0 0.0
    %102 = vmatprep.subr.mxu0 0.0
    %103 = vmatpush1.msra.mxu0 0.0
    %104 = vmatprep.subr.mxu0 0.0
    %105 = vmatpush1.msra.mxu0 0.0
    %106 = vmatprep.subr.mxu0 0.0
    %107 = vmatpush1.msra.mxu0 0.0
    %108 = vmatprep.subr.mxu0 0.0
    %109 = vmatpush1.msra.mxu0 0.0
    %110 = vmatprep.subr.mxu0 0.0
    %111 = vmatpush1.msra.mxu0 0.0
    %112 = vmatprep.mubr.f32.mxu0 0.0
    %113 = vmatmul.mubr.f32.gmra.mrb[0].mxu0 %v46
    %v114 = vpop.f32.mrb[0].mxu0
    %v115 = vadd.f32 %v42, %v114
    %v116 = vpop.f32.mrb[0].mxu0
    %117 = vdwg.mxu0
    %v118 = vtanh.pop %v115
    %v119 = vld [vmem:[%s3] sm:$0xff]
    %v120 = vld [vmem:[%s3 + $0x8] sm:$0xff]
    %v121 = vld [vmem:[%s3 + $0x10] sm:$0xff]
    %v122 = vld [vmem:[%s3 + $0x18] sm:$0xff]
    %v123 = vld [vmem:[%s4] sm:$0x1]
    %v125 = vlaneseq
    %v126 = vshrl.u32 %v125, 7
    %v127 = vsub.s32 0, %v126
    %v128 = vrot.slane %v123, %v127
    %vm130 = vcmask 261120
    %v132 = vsel %vm130, %v118, 0
    %134 = vmatprep.subr.mxu0 0.0
    %135 = vmatpush1.msra.mxu0 %v119
    %136 = vmatprep.subr.mxu0 0.0
    %137 = vmatpush1.msra.mxu0 %v120
    %138 = vmatprep.subr.mxu0 0.0
    %139 = vmatpush1.msra.mxu0 %v121
    %140 = vmatprep.subr.mxu0 0.0
    %141 = vmatpush1.msra.mxu0 %v122
    %142 = vmatprep.subr.mxu0 0.0
    %143 = vmatpush1.msra.mxu0 0.0
    %144 = vmatprep.subr.mxu0 0.0
    %145 = vmatpush1.msra.mxu0 0.0
    %146 = vmatprep.subr.mxu0 0.0
    %147 = vmatpush1.msra.mxu0 0.0
    %148 = vmatprep.subr.mxu0 0.0
    %149 = vmatpush1.msra.mxu0 0.0
    %150 = vmatprep.subr.mxu0 0.0
    %151 = vmatpush1.msra.mxu0 0.0
    %152 = vmatprep.subr.mxu0 0.0
    %153 = vmatpush1.msra.mxu0 0.0
    %154 = vmatprep.subr.mxu0 0.0
    %155 = vmatpush1.msra.mxu0 0.0
    %156 = vmatprep.subr.mxu0 0.0
    %157 = vmatpush1.msra.mxu0 0.0
    %158 = vmatprep.subr.mxu0 0.0
    %159 = vmatpush1.msra.mxu0 0.0
    %160 = vmatprep.subr.mxu0 0.0
    %161 = vmatpush1.msra.mxu0 0.0
    %162 = vmatprep.subr.mxu0 0.0
    %163 = vmatpush1.msra.mxu0 0.0
    %164 = vmatprep.subr.mxu0 0.0
    %165 = vmatpush1.msra.mxu0 0.0
    %166 = vmatprep.subr.mxu0 0.0
    %167 = vmatpush1.msra.mxu0 0.0
    %168 = vmatprep.subr.mxu0 0.0
    %169 = vmatpush1.msra.mxu0 0.0
    %170 = vmatprep.subr.mxu0 0.0
    %171 = vmatpush1.msra.mxu0 0.0
    %172 = vmatprep.subr.mxu0 0.0
    %173 = vmatpush1.msra.mxu0 0.0
    %174 = vmatprep.subr.mxu0 0.0
    %175 = vmatpush1.msra.mxu0 0.0
    %176 = vmatprep.subr.mxu0 0.0
    %177 = vmatpush1.msra.mxu0 0.0
    %178 = vmatprep.subr.mxu0 0.0
    %179 = vmatpush1.msra.mxu0 0.0
    %180 = vmatprep.subr.mxu0 0.0
    %181 = vmatpush1.msra.mxu0 0.0
    %182 = vmatprep.subr.mxu0 0.0
    %183 = vmatpush1.msra.mxu0 0.0
    %184 = vmatprep.subr.mxu0 0.0
    %185 = vmatpush1.msra.mxu0 0.0
    %186 = vmatprep.subr.mxu0 0.0
    %187 = vmatpush1.msra.mxu0 0.0
    %188 = vmatprep.subr.mxu0 0.0
    %189 = vmatpush1.msra.mxu0 0.0
    %190 = vmatprep.subr.mxu0 0.0
    %191 = vmatpush1.msra.mxu0 0.0
    %192 = vmatprep.subr.mxu0 0.0
    %193 = vmatpush1.msra.mxu0 0.0
    %194 = vmatprep.subr.mxu0 0.0
    %195 = vmatpush1.msra.mxu0 0.0
    %196 = vmatprep.subr.mxu0 0.0
    %197 = vmatpush1.msra.mxu0 0.0
    %198 = vmatprep.mubr.f32.mxu0 0.0
    %199 = vmatmul.mubr.f32.gmra.mrb[0].mxu0 %v132
    %v200 = vpop.f32.mrb[0].mxu0
    %v201 = vadd.f32 %v128, %v200
    %v202 = vpop.f32.mrb[0].mxu0
    %203 = vdwg.mxu0
    %v204 = vtanh.pop %v201
    %v205 = vld [vmem:[%s5] sm:$0xff]
    %v206 = vld [vmem:[%s5 + $0x8] sm:$0xff]
    %v207 = vld [vmem:[%s5 + $0x10] sm:$0xff]
    %v208 = vld [vmem:[%s5 + $0x18] sm:$0xff]
    %v209 = vld [vmem:[%s6] sm:$0x1]
    %v211 = vlaneseq
    %v212 = vshrl.u32 %v211, 7
    %v213 = vsub.s32 0, %v212
    %v214 = vrot.slane %v209, %v213
    %v217 = vsel %vm130, %v204, 0
    %219 = vmatprep.subr.mxu0 0.0
    %220 = vmatpush1.msra.mxu0 %v205
    %221 = vmatprep.subr.mxu0 0.0
    %222 = vmatpush1.msra.mxu0 %v206
    %223 = vmatprep.subr.mxu0 0.0
    %224 = vmatpush1.msra.mxu0 %v207
    %225 = vmatprep.subr.mxu0 0.0
    %226 = vmatpush1.msra.mxu0 %v208
    %227 = vmatprep.subr.mxu0 0.0
    %228 = vmatpush1.msra.mxu0 0.0
    %229 = vmatprep.subr.mxu0 0.0
    %230 = vmatpush1.msra.mxu0 0.0
    %231 = vmatprep.subr.mxu0 0.0
    %232 = vmatpush1.msra.mxu0 0.0
    %233 = vmatprep.subr.mxu0 0.0
    %234 = vmatpush1.msra.mxu0 0.0
    %235 = vmatprep.subr.mxu0 0.0
    %236 = vmatpush1.msra.mxu0 0.0
    %237 = vmatprep.subr.mxu0 0.0
    %238 = vmatpush1.msra.mxu0 0.0
    %239 = vmatprep.subr.mxu0 0.0
    %240 = vmatpush1.msra.mxu0 0.0
    %241 = vmatprep.subr.mxu0 0.0
    %242 = vmatpush1.msra.mxu0 0.0
    %243 = vmatprep.subr.mxu0 0.0
    %244 = vmatpush1.msra.mxu0 0.0
    %245 = vmatprep.subr.mxu0 0.0
    %246 = vmatpush1.msra.mxu0 0.0
    %247 = vmatprep.subr.mxu0 0.0
    %248 = vmatpush1.msra.mxu0 0.0
    %249 = vmatprep.subr.mxu0 0.0
    %250 = vmatpush1.msra.mxu0 0.0
    %251 = vmatprep.subr.mxu0 0.0
    %252 = vmatpush1.msra.mxu0 0.0
    %253 = vmatprep.subr.mxu0 0.0
    %254 = vmatpush1.msra.mxu0 0.0
    %255 = vmatprep.subr.mxu0 0.0
    %256 = vmatpush1.msra.mxu0 0.0
    %257 = vmatprep.subr.mxu0 0.0
    %258 = vmatpush1.msra.mxu0 0.0
    %259 = vmatprep.subr.mxu0 0.0
    %260 = vmatpush1.msra.mxu0 0.0
    %261 = vmatprep.subr.mxu0 0.0
    %262 = vmatpush1.msra.mxu0 0.0
    %263 = vmatprep.subr.mxu0 0.0
    %264 = vmatpush1.msra.mxu0 0.0
    %265 = vmatprep.subr.mxu0 0.0
    %266 = vmatpush1.msra.mxu0 0.0
    %267 = vmatprep.subr.mxu0 0.0
    %268 = vmatpush1.msra.mxu0 0.0
    %269 = vmatprep.subr.mxu0 0.0
    %270 = vmatpush1.msra.mxu0 0.0
    %271 = vmatprep.subr.mxu0 0.0
    %272 = vmatpush1.msra.mxu0 0.0
    %273 = vmatprep.subr.mxu0 0.0
    %274 = vmatpush1.msra.mxu0 0.0
    %275 = vmatprep.subr.mxu0 0.0
    %276 = vmatpush1.msra.mxu0 0.0
    %277 = vmatprep.subr.mxu0 0.0
    %278 = vmatpush1.msra.mxu0 0.0
    %279 = vmatprep.subr.mxu0 0.0
    %280 = vmatpush1.msra.mxu0 0.0
    %281 = vmatprep.subr.mxu0 0.0
    %282 = vmatpush1.msra.mxu0 0.0
    %283 = vmatprep.mubr.f32.mxu0 0.0
    %284 = vmatmul.mubr.f32.gmra.mrb[0].mxu0 %v217
    %v285 = vpop.f32.mrb[0].mxu0
    %v286 = vadd.f32 %v214, %v285
    %v287 = vpop.f32.mrb[0].mxu0
    %288 = vdwg.mxu0
    %v289 = vld [vmem:[%s8] sm:$0xff]
    %v290 = vld [vmem:[%s8 + $0x8] sm:$0xff]
    %v291 = vld [vmem:[%s8 + $0x10] sm:$0xff]
    %v292 = vld [vmem:[%s8 + $0x18] sm:$0xff]
    %v293 = vld [vmem:[%s8 + $0x20] sm:$0xff]
    %v294 = vld [vmem:[%s8 + $0x28] sm:$0xff]
    %v295 = vld [vmem:[%s8 + $0x30] sm:$0xff]
    %v296 = vld [vmem:[%s8 + $0x38] sm:$0xff]
    %v297 = vld [vmem:[%s8 + $0x40] sm:$0xff]
    %v298 = vld [vmem:[%s8 + $0x48] sm:$0xff]
    %v299 = vld [vmem:[%s8 + $0x50] sm:$0xff]
    %v300 = vld [vmem:[%s8 + $0x58] sm:$0xff]
    %v301 = vld [vmem:[%s8 + $0x60] sm:$0xff]
    %v302 = vld [vmem:[%s8 + $0x68] sm:$0xff]
    %v303 = vld [vmem:[%s8 + $0x70] sm:$0xff]
    %v304 = vld [vmem:[%s8 + $0x78] sm:$0xff]
    %v305 = vld [vmem:[%s8 + $0x80] sm:$0xff]
    %v306 = vld [vmem:[%s8 + $0x88] sm:$0xff]
    %v307 = vld [vmem:[%s8 + $0x90] sm:$0xff]
    %v308 = vld [vmem:[%s8 + $0x98] sm:$0xff]
    %v309 = vld [vmem:[%s8 + $0xa0] sm:$0xff]
    %v310 = vld [vmem:[%s8 + $0xa8] sm:$0xff]
    %v311 = vld [vmem:[%s8 + $0xb0] sm:$0xff]
    %v312 = vld [vmem:[%s8 + $0xb8] sm:$0xff]
    %v313 = vld [vmem:[%s8 + $0xc0] sm:$0xff]
    %v314 = vld [vmem:[%s8 + $0xc8] sm:$0xff]
    %v315 = vld [vmem:[%s8 + $0xd0] sm:$0xff]
    %v316 = vld [vmem:[%s8 + $0xd8] sm:$0xff]
    %v317 = vld [vmem:[%s8 + $0xe0] sm:$0xff]
    %v318 = vld [vmem:[%s8 + $0xe8] sm:$0xff]
    %v319 = vld [vmem:[%s8 + $0xf0] sm:$0xff]
    %v320 = vld [vmem:[%s8 + $0xf8] sm:$0xff]
    %v321 = vld [vmem:[%s7] sm:$0xff]
    %v322 = vld [vmem:[%s7 + $0x8] sm:$0xff]
    %v323 = vld [vmem:[%s7 + $0x10] sm:$0xff]
    %v324 = vld [vmem:[%s7 + $0x18] sm:$0xff]
    %v325 = vld [vmem:[%s7 + $0x20] sm:$0xff]
    %v326 = vld [vmem:[%s7 + $0x28] sm:$0xff]
    %v327 = vld [vmem:[%s7 + $0x30] sm:$0xff]
    %v328 = vld [vmem:[%s7 + $0x38] sm:$0xff]
    %v329 = vld [vmem:[%s7 + $0x40] sm:$0xff]
    %v330 = vld [vmem:[%s7 + $0x48] sm:$0xff]
    %v331 = vld [vmem:[%s7 + $0x50] sm:$0xff]
    %v332 = vld [vmem:[%s7 + $0x58] sm:$0xff]
    %v333 = vld [vmem:[%s7 + $0x60] sm:$0xff]
    %v334 = vld [vmem:[%s7 + $0x68] sm:$0xff]
    %v335 = vld [vmem:[%s7 + $0x70] sm:$0xff]
    %v336 = vld [vmem:[%s7 + $0x78] sm:$0xff]
    %v337 = vld [vmem:[%s7 + $0x80] sm:$0xff]
    %v338 = vld [vmem:[%s7 + $0x88] sm:$0xff]
    %v339 = vld [vmem:[%s7 + $0x90] sm:$0xff]
    %v340 = vld [vmem:[%s7 + $0x98] sm:$0xff]
    %v341 = vld [vmem:[%s7 + $0xa0] sm:$0xff]
    %v342 = vld [vmem:[%s7 + $0xa8] sm:$0xff]
    %v343 = vld [vmem:[%s7 + $0xb0] sm:$0xff]
    %v344 = vld [vmem:[%s7 + $0xb8] sm:$0xff]
    %v345 = vld [vmem:[%s7 + $0xc0] sm:$0xff]
    %v346 = vld [vmem:[%s7 + $0xc8] sm:$0xff]
    %v347 = vld [vmem:[%s7 + $0xd0] sm:$0xff]
    %v348 = vld [vmem:[%s7 + $0xd8] sm:$0xff]
    %v349 = vld [vmem:[%s7 + $0xe0] sm:$0xff]
    %v350 = vld [vmem:[%s7 + $0xe8] sm:$0xff]
    %v351 = vld [vmem:[%s7 + $0xf0] sm:$0xff]
    %v352 = vld [vmem:[%s7 + $0xf8] sm:$0xff]
    %v353 = vlaneseq
    %v354 = vshrl.u32 %v353, 7
    %v355 = vsub.s32 0, %v354
    %v356 = vrot.slane %v286, %v355
    %358 = vbcast.lane.b32.xlu0 %v356, 256
    %v359 = vpop.permute.xlu0 %358
    %s361 = sor.u32 256, 8
    %362 = vbcast.lane.b32.xlu0 %v356, %s361
    %v363 = vpop.permute.xlu0 %362
    %s365 = sor.u32 256, 16
    %366 = vbcast.lane.b32.xlu0 %v356, %s365
    %v367 = vpop.permute.xlu0 %366
    %s369 = sor.u32 256, 24
    %370 = vbcast.lane.b32.xlu0 %v356, %s369
    %v371 = vpop.permute.xlu0 %370
    %v372 = vlaneseq
    %v373 = vshrl.u32 %v372, 7
    %v374 = vsub.s32 1, %v373
    %v375 = vrot.slane %v286, %v374
    %377 = vbcast.lane.b32.xlu0 %v375, 256
    %v378 = vpop.permute.xlu0 %377
    %s380 = sor.u32 256, 8
    %381 = vbcast.lane.b32.xlu0 %v375, %s380
    %v382 = vpop.permute.xlu0 %381
    %s384 = sor.u32 256, 16
    %385 = vbcast.lane.b32.xlu0 %v375, %s384
    %v386 = vpop.permute.xlu0 %385
    %s388 = sor.u32 256, 24
    %389 = vbcast.lane.b32.xlu0 %v375, %s388
    %v390 = vpop.permute.xlu0 %389
    %v391 = vlaneseq
    %v392 = vshrl.u32 %v391, 7
    %v393 = vsub.s32 2, %v392
    %v394 = vrot.slane %v286, %v393
    %396 = vbcast.lane.b32.xlu0 %v394, 256
    %v397 = vpop.permute.xlu0 %396
    %s399 = sor.u32 256, 8
    %400 = vbcast.lane.b32.xlu0 %v394, %s399
    %v401 = vpop.permute.xlu0 %400
    %s403 = sor.u32 256, 16
    %404 = vbcast.lane.b32.xlu0 %v394, %s403
    %v405 = vpop.permute.xlu0 %404
    %s407 = sor.u32 256, 24
    %408 = vbcast.lane.b32.xlu0 %v394, %s407
    %v409 = vpop.permute.xlu0 %408
    %v410 = vlaneseq
    %v411 = vshrl.u32 %v410, 7
    %v412 = vsub.s32 3, %v411
    %v413 = vrot.slane %v286, %v412
    %415 = vbcast.lane.b32.xlu0 %v413, 256
    %v416 = vpop.permute.xlu0 %415
    %s418 = sor.u32 256, 8
    %419 = vbcast.lane.b32.xlu0 %v413, %s418
    %v420 = vpop.permute.xlu0 %419
    %s422 = sor.u32 256, 16
    %423 = vbcast.lane.b32.xlu0 %v413, %s422
    %v424 = vpop.permute.xlu0 %423
    %s426 = sor.u32 256, 24
    %427 = vbcast.lane.b32.xlu0 %v413, %s426
    %v428 = vpop.permute.xlu0 %427
    %v429 = vlaneseq
    %v430 = vshrl.u32 %v429, 7
    %v431 = vsub.s32 4, %v430
    %v432 = vrot.slane %v286, %v431
    %434 = vbcast.lane.b32.xlu0 %v432, 256
    %v435 = vpop.permute.xlu0 %434
    %s437 = sor.u32 256, 8
    %438 = vbcast.lane.b32.xlu0 %v432, %s437
    %v439 = vpop.permute.xlu0 %438
    %s441 = sor.u32 256, 16
    %442 = vbcast.lane.b32.xlu0 %v432, %s441
    %v443 = vpop.permute.xlu0 %442
    %s445 = sor.u32 256, 24
    %446 = vbcast.lane.b32.xlu0 %v432, %s445
    %v447 = vpop.permute.xlu0 %446
    %v448 = vlaneseq
    %v449 = vshrl.u32 %v448, 7
    %v450 = vsub.s32 5, %v449
    %v451 = vrot.slane %v286, %v450
    %453 = vbcast.lane.b32.xlu0 %v451, 256
    %v454 = vpop.permute.xlu0 %453
    %s456 = sor.u32 256, 8
    %457 = vbcast.lane.b32.xlu0 %v451, %s456
    %v458 = vpop.permute.xlu0 %457
    %s460 = sor.u32 256, 16
    %461 = vbcast.lane.b32.xlu0 %v451, %s460
    %v462 = vpop.permute.xlu0 %461
    %s464 = sor.u32 256, 24
    %465 = vbcast.lane.b32.xlu0 %v451, %s464
    %v466 = vpop.permute.xlu0 %465
    %v467 = vlaneseq
    %v468 = vshrl.u32 %v467, 7
    %v469 = vsub.s32 6, %v468
    %v470 = vrot.slane %v286, %v469
    %472 = vbcast.lane.b32.xlu0 %v470, 256
    %v473 = vpop.permute.xlu0 %472
    %s475 = sor.u32 256, 8
    %476 = vbcast.lane.b32.xlu0 %v470, %s475
    %v477 = vpop.permute.xlu0 %476
    %s479 = sor.u32 256, 16
    %480 = vbcast.lane.b32.xlu0 %v470, %s479
    %v481 = vpop.permute.xlu0 %480
    %s483 = sor.u32 256, 24
    %484 = vbcast.lane.b32.xlu0 %v470, %s483
    %v485 = vpop.permute.xlu0 %484
    %v486 = vlaneseq
    %v487 = vshrl.u32 %v486, 7
    %v488 = vsub.s32 7, %v487
    %v489 = vrot.slane %v286, %v488
    %491 = vbcast.lane.b32.xlu0 %v489, 256
    %v492 = vpop.permute.xlu0 %491
    %s494 = sor.u32 256, 8
    %495 = vbcast.lane.b32.xlu0 %v489, %s494
    %v496 = vpop.permute.xlu0 %495
    %s498 = sor.u32 256, 16
    %499 = vbcast.lane.b32.xlu0 %v489, %s498
    %v500 = vpop.permute.xlu0 %499
    %s502 = sor.u32 256, 24
    %503 = vbcast.lane.b32.xlu0 %v489, %s502
    %v504 = vpop.permute.xlu0 %503
    %v505 = vmul.f32 %v359, %v289
    %v506 = vmul.f32 %v363, %v290
    %v507 = vmul.f32 %v367, %v291
    %v508 = vmul.f32 %v371, %v292
    %v509 = vmul.f32 %v378, %v293
    %v510 = vmul.f32 %v382, %v294
    %v511 = vmul.f32 %v386, %v295
    %v512 = vmul.f32 %v390, %v296
    %v513 = vmul.f32 %v397, %v297
    %v514 = vmul.f32 %v401, %v298
    %v515 = vmul.f32 %v405, %v299
    %v516 = vmul.f32 %v409, %v300
    %v517 = vmul.f32 %v416, %v301
    %v518 = vmul.f32 %v420, %v302
    %v519 = vmul.f32 %v424, %v303
    %v520 = vmul.f32 %v428, %v304
    %v521 = vmul.f32 %v435, %v305
    %v522 = vmul.f32 %v439, %v306
    %v523 = vmul.f32 %v443, %v307
    %v524 = vmul.f32 %v447, %v308
    %v525 = vmul.f32 %v454, %v309
    %v526 = vmul.f32 %v458, %v310
    %v527 = vmul.f32 %v462, %v311
    %v528 = vmul.f32 %v466, %v312
    %v529 = vmul.f32 %v473, %v313
    %v530 = vmul.f32 %v477, %v314
    %v531 = vmul.f32 %v481, %v315
    %v532 = vmul.f32 %v485, %v316
    %v533 = vmul.f32 %v492, %v317
    %v534 = vmul.f32 %v496, %v318
    %v535 = vmul.f32 %v500, %v319
    %v536 = vmul.f32 %v504, %v320
    %v537 = vsel %vm130, %v505, 0.0
    %v538 = vsel %vm130, %v506, 0.0
    %v539 = vadd.f32 %v537, %v538
    %v540 = vsel %vm130, %v507, 0.0
    %v541 = vadd.f32 %v539, %v540
    %v542 = vsel %vm130, %v508, 0.0
    %v543 = vadd.f32 %v541, %v542
    %v544 = vrot.slane %v543, 4
    %v545 = vadd.f32 %v543, %v544
    %v546 = vrot.slane %v545, 2
    %v547 = vadd.f32 %v545, %v546
    %v548 = vrot.slane %v547, 1
    %v549 = vadd.f32 %v547, %v548
    %v550 = vsel %vm130, %v509, 0.0
    %v551 = vsel %vm130, %v510, 0.0
    %v552 = vadd.f32 %v550, %v551
    %v553 = vsel %vm130, %v511, 0.0
    %v554 = vadd.f32 %v552, %v553
    %v555 = vsel %vm130, %v512, 0.0
    %v556 = vadd.f32 %v554, %v555
    %v557 = vrot.slane %v556, 4
    %v558 = vadd.f32 %v556, %v557
    %v559 = vrot.slane %v558, 2
    %v560 = vadd.f32 %v558, %v559
    %v561 = vrot.slane %v560, 1
    %v562 = vadd.f32 %v560, %v561
    %v563 = vsel %vm130, %v513, 0.0
    %v564 = vsel %vm130, %v514, 0.0
    %v565 = vadd.f32 %v563, %v564
    %v566 = vsel %vm130, %v515, 0.0
    %v567 = vadd.f32 %v565, %v566
    %v568 = vsel %vm130, %v516, 0.0
    %v569 = vadd.f32 %v567, %v568
    %v570 = vrot.slane %v569, 4
    %v571 = vadd.f32 %v569, %v570
    %v572 = vrot.slane %v571, 2
    %v573 = vadd.f32 %v571, %v572
    %v574 = vrot.slane %v573, 1
    %v575 = vadd.f32 %v573, %v574
    %v576 = vsel %vm130, %v517, 0.0
    %v577 = vsel %vm130, %v518, 0.0
    %v578 = vadd.f32 %v576, %v577
    %v579 = vsel %vm130, %v519, 0.0
    %v580 = vadd.f32 %v578, %v579
    %v581 = vsel %vm130, %v520, 0.0
    %v582 = vadd.f32 %v580, %v581
    %v583 = vrot.slane %v582, 4
    %v584 = vadd.f32 %v582, %v583
    %v585 = vrot.slane %v584, 2
    %v586 = vadd.f32 %v584, %v585
    %v587 = vrot.slane %v586, 1
    %v588 = vadd.f32 %v586, %v587
    %v589 = vsel %vm130, %v521, 0.0
    %v590 = vsel %vm130, %v522, 0.0
    %v591 = vadd.f32 %v589, %v590
    %v592 = vsel %vm130, %v523, 0.0
    %v593 = vadd.f32 %v591, %v592
    %v594 = vsel %vm130, %v524, 0.0
    %v595 = vadd.f32 %v593, %v594
    %v596 = vrot.slane %v595, 4
    %v597 = vadd.f32 %v595, %v596
    %v598 = vrot.slane %v597, 2
    %v599 = vadd.f32 %v597, %v598
    %v600 = vrot.slane %v599, 1
    %v601 = vadd.f32 %v599, %v600
    %v602 = vsel %vm130, %v525, 0.0
    %v603 = vsel %vm130, %v526, 0.0
    %v604 = vadd.f32 %v602, %v603
    %v605 = vsel %vm130, %v527, 0.0
    %v606 = vadd.f32 %v604, %v605
    %v607 = vsel %vm130, %v528, 0.0
    %v608 = vadd.f32 %v606, %v607
    %v609 = vrot.slane %v608, 4
    %v610 = vadd.f32 %v608, %v609
    %v611 = vrot.slane %v610, 2
    %v612 = vadd.f32 %v610, %v611
    %v613 = vrot.slane %v612, 1
    %v614 = vadd.f32 %v612, %v613
    %v615 = vsel %vm130, %v529, 0.0
    %v616 = vsel %vm130, %v530, 0.0
    %v617 = vadd.f32 %v615, %v616
    %v618 = vsel %vm130, %v531, 0.0
    %v619 = vadd.f32 %v617, %v618
    %v620 = vsel %vm130, %v532, 0.0
    %v621 = vadd.f32 %v619, %v620
    %v622 = vrot.slane %v621, 4
    %v623 = vadd.f32 %v621, %v622
    %v624 = vrot.slane %v623, 2
    %v625 = vadd.f32 %v623, %v624
    %v626 = vrot.slane %v625, 1
    %v627 = vadd.f32 %v625, %v626
    %v628 = vsel %vm130, %v533, 0.0
    %v629 = vsel %vm130, %v534, 0.0
    %v630 = vadd.f32 %v628, %v629
    %v631 = vsel %vm130, %v535, 0.0
    %v632 = vadd.f32 %v630, %v631
    %v633 = vsel %vm130, %v536, 0.0
    %v634 = vadd.f32 %v632, %v633
    %v635 = vrot.slane %v634, 4
    %v636 = vadd.f32 %v634, %v635
    %v637 = vrot.slane %v636, 2
    %v638 = vadd.f32 %v636, %v637
    %v639 = vrot.slane %v638, 1
    %v640 = vadd.f32 %v638, %v639
    %642 = vbcast.lane.b32.xlu0 %v549, 256
    %v643 = vpop.permute.xlu0 %642
    %s645 = sor.u32 256, 8
    %646 = vbcast.lane.b32.xlu0 %v549, %s645
    %v647 = vpop.permute.xlu0 %646
    %s649 = sor.u32 256, 16
    %650 = vbcast.lane.b32.xlu0 %v549, %s649
    %v651 = vpop.permute.xlu0 %650
    %s653 = sor.u32 256, 24
    %654 = vbcast.lane.b32.xlu0 %v549, %s653
    %v655 = vpop.permute.xlu0 %654
    %657 = vbcast.lane.b32.xlu0 %v562, 256
    %v658 = vpop.permute.xlu0 %657
    %s660 = sor.u32 256, 8
    %661 = vbcast.lane.b32.xlu0 %v562, %s660
    %v662 = vpop.permute.xlu0 %661
    %s664 = sor.u32 256, 16
    %665 = vbcast.lane.b32.xlu0 %v562, %s664
    %v666 = vpop.permute.xlu0 %665
    %s668 = sor.u32 256, 24
    %669 = vbcast.lane.b32.xlu0 %v562, %s668
    %v670 = vpop.permute.xlu0 %669
    %672 = vbcast.lane.b32.xlu0 %v575, 256
    %v673 = vpop.permute.xlu0 %672
    %s675 = sor.u32 256, 8
    %676 = vbcast.lane.b32.xlu0 %v575, %s675
    %v677 = vpop.permute.xlu0 %676
    %s679 = sor.u32 256, 16
    %680 = vbcast.lane.b32.xlu0 %v575, %s679
    %v681 = vpop.permute.xlu0 %680
    %s683 = sor.u32 256, 24
    %684 = vbcast.lane.b32.xlu0 %v575, %s683
    %v685 = vpop.permute.xlu0 %684
    %687 = vbcast.lane.b32.xlu0 %v588, 256
    %v688 = vpop.permute.xlu0 %687
    %s690 = sor.u32 256, 8
    %691 = vbcast.lane.b32.xlu0 %v588, %s690
    %v692 = vpop.permute.xlu0 %691
    %s694 = sor.u32 256, 16
    %695 = vbcast.lane.b32.xlu0 %v588, %s694
    %v696 = vpop.permute.xlu0 %695
    %s698 = sor.u32 256, 24
    %699 = vbcast.lane.b32.xlu0 %v588, %s698
    %v700 = vpop.permute.xlu0 %699
    %702 = vbcast.lane.b32.xlu0 %v601, 256
    %v703 = vpop.permute.xlu0 %702
    %s705 = sor.u32 256, 8
    %706 = vbcast.lane.b32.xlu0 %v601, %s705
    %v707 = vpop.permute.xlu0 %706
    %s709 = sor.u32 256, 16
    %710 = vbcast.lane.b32.xlu0 %v601, %s709
    %v711 = vpop.permute.xlu0 %710
    %s713 = sor.u32 256, 24
    %714 = vbcast.lane.b32.xlu0 %v601, %s713
    %v715 = vpop.permute.xlu0 %714
    %717 = vbcast.lane.b32.xlu0 %v614, 256
    %v718 = vpop.permute.xlu0 %717
    %s720 = sor.u32 256, 8
    %721 = vbcast.lane.b32.xlu0 %v614, %s720
    %v722 = vpop.permute.xlu0 %721
    %s724 = sor.u32 256, 16
    %725 = vbcast.lane.b32.xlu0 %v614, %s724
    %v726 = vpop.permute.xlu0 %725
    %s728 = sor.u32 256, 24
    %729 = vbcast.lane.b32.xlu0 %v614, %s728
    %v730 = vpop.permute.xlu0 %729
    %732 = vbcast.lane.b32.xlu0 %v627, 256
    %v733 = vpop.permute.xlu0 %732
    %s735 = sor.u32 256, 8
    %736 = vbcast.lane.b32.xlu0 %v627, %s735
    %v737 = vpop.permute.xlu0 %736
    %s739 = sor.u32 256, 16
    %740 = vbcast.lane.b32.xlu0 %v627, %s739
    %v741 = vpop.permute.xlu0 %740
    %s743 = sor.u32 256, 24
    %744 = vbcast.lane.b32.xlu0 %v627, %s743
    %v745 = vpop.permute.xlu0 %744
    %747 = vbcast.lane.b32.xlu0 %v640, 256
    %v748 = vpop.permute.xlu0 %747
    %s750 = sor.u32 256, 8
    %751 = vbcast.lane.b32.xlu0 %v640, %s750
    %v752 = vpop.permute.xlu0 %751
    %s754 = sor.u32 256, 16
    %755 = vbcast.lane.b32.xlu0 %v640, %s754
    %v756 = vpop.permute.xlu0 %755
    %s758 = sor.u32 256, 24
    %759 = vbcast.lane.b32.xlu0 %v640, %s758
    %v760 = vpop.permute.xlu0 %759
    %v761 = vmul.f32 %v643, %v321
    %v762 = vmul.f32 %v647, %v322
    %v763 = vmul.f32 %v651, %v323
    %v764 = vmul.f32 %v655, %v324
    %v765 = vmul.f32 %v658, %v325
    %v766 = vmul.f32 %v662, %v326
    %v767 = vmul.f32 %v666, %v327
    %v768 = vmul.f32 %v670, %v328
    %v769 = vmul.f32 %v673, %v329
    %v770 = vmul.f32 %v677, %v330
    %v771 = vmul.f32 %v681, %v331
    %v772 = vmul.f32 %v685, %v332
    %v773 = vmul.f32 %v688, %v333
    %v774 = vmul.f32 %v692, %v334
    %v775 = vmul.f32 %v696, %v335
    %v776 = vmul.f32 %v700, %v336
    %v777 = vmul.f32 %v703, %v337
    %v778 = vmul.f32 %v707, %v338
    %v779 = vmul.f32 %v711, %v339
    %v780 = vmul.f32 %v715, %v340
    %v781 = vmul.f32 %v718, %v341
    %v782 = vmul.f32 %v722, %v342
    %v783 = vmul.f32 %v726, %v343
    %v784 = vmul.f32 %v730, %v344
    %v785 = vmul.f32 %v733, %v345
    %v786 = vmul.f32 %v737, %v346
    %v787 = vmul.f32 %v741, %v347
    %v788 = vmul.f32 %v745, %v348
    %v789 = vmul.f32 %v748, %v349
    %v790 = vmul.f32 %v752, %v350
    %v791 = vmul.f32 %v756, %v351
    %v792 = vmul.f32 %v760, %v352
    %v793 = vsel %vm44, %v761, 0.0
    %v794 = vsel %vm44, %v762, 0.0
    %v795 = vadd.f32 %v793, %v794
    %v796 = vsel %vm44, %v763, 0.0
    %v797 = vadd.f32 %v795, %v796
    %v798 = vsel %vm44, %v764, 0.0
    %v799 = vadd.f32 %v797, %v798
    %v800 = vrot.slane %v799, 4
    %v801 = vadd.f32 %v799, %v800
    %v802 = vrot.slane %v801, 2
    %v803 = vadd.f32 %v801, %v802
    %v804 = vrot.slane %v803, 1
    %v805 = vadd.f32 %v803, %v804
    %v806 = vsel %vm44, %v765, 0.0
    %v807 = vsel %vm44, %v766, 0.0
    %v808 = vadd.f32 %v806, %v807
    %v809 = vsel %vm44, %v767, 0.0
    %v810 = vadd.f32 %v808, %v809
    %v811 = vsel %vm44, %v768, 0.0
    %v812 = vadd.f32 %v810, %v811
    %v813 = vrot.slane %v812, 4
    %v814 = vadd.f32 %v812, %v813
    %v815 = vrot.slane %v814, 2
    %v816 = vadd.f32 %v814, %v815
    %v817 = vrot.slane %v816, 1
    %v818 = vadd.f32 %v816, %v817
    %v819 = vsel %vm44, %v769, 0.0
    %v820 = vsel %vm44, %v770, 0.0
    %v821 = vadd.f32 %v819, %v820
    %v822 = vsel %vm44, %v771, 0.0
    %v823 = vadd.f32 %v821, %v822
    %v824 = vsel %vm44, %v772, 0.0
    %v825 = vadd.f32 %v823, %v824
    %v826 = vrot.slane %v825, 4
    %v827 = vadd.f32 %v825, %v826
    %v828 = vrot.slane %v827, 2
    %v829 = vadd.f32 %v827, %v828
    %v830 = vrot.slane %v829, 1
    %v831 = vadd.f32 %v829, %v830
    %v832 = vsel %vm44, %v773, 0.0
    %v833 = vsel %vm44, %v774, 0.0
    %v834 = vadd.f32 %v832, %v833
    %v835 = vsel %vm44, %v775, 0.0
    %v836 = vadd.f32 %v834, %v835
    %v837 = vsel %vm44, %v776, 0.0
    %v838 = vadd.f32 %v836, %v837
    %v839 = vrot.slane %v838, 4
    %v840 = vadd.f32 %v838, %v839
    %v841 = vrot.slane %v840, 2
    %v842 = vadd.f32 %v840, %v841
    %v843 = vrot.slane %v842, 1
    %v844 = vadd.f32 %v842, %v843
    %v845 = vsel %vm44, %v777, 0.0
    %v846 = vsel %vm44, %v778, 0.0
    %v847 = vadd.f32 %v845, %v846
    %v848 = vsel %vm44, %v779, 0.0
    %v849 = vadd.f32 %v847, %v848
    %v850 = vsel %vm44, %v780, 0.0
    %v851 = vadd.f32 %v849, %v850
    %v852 = vrot.slane %v851, 4
    %v853 = vadd.f32 %v851, %v852
    %v854 = vrot.slane %v853, 2
    %v855 = vadd.f32 %v853, %v854
    %v856 = vrot.slane %v855, 1
    %v857 = vadd.f32 %v855, %v856
    %v858 = vsel %vm44, %v781, 0.0
    %v859 = vsel %vm44, %v782, 0.0
    %v860 = vadd.f32 %v858, %v859
    %v861 = vsel %vm44, %v783, 0.0
    %v862 = vadd.f32 %v860, %v861
    %v863 = vsel %vm44, %v784, 0.0
    %v864 = vadd.f32 %v862, %v863
    %v865 = vrot.slane %v864, 4
    %v866 = vadd.f32 %v864, %v865
    %v867 = vrot.slane %v866, 2
    %v868 = vadd.f32 %v866, %v867
    %v869 = vrot.slane %v868, 1
    %v870 = vadd.f32 %v868, %v869
    %v871 = vsel %vm44, %v785, 0.0
    %v872 = vsel %vm44, %v786, 0.0
    %v873 = vadd.f32 %v871, %v872
    %v874 = vsel %vm44, %v787, 0.0
    %v875 = vadd.f32 %v873, %v874
    %v876 = vsel %vm44, %v788, 0.0
    %v877 = vadd.f32 %v875, %v876
    %v878 = vrot.slane %v877, 4
    %v879 = vadd.f32 %v877, %v878
    %v880 = vrot.slane %v879, 2
    %v881 = vadd.f32 %v879, %v880
    %v882 = vrot.slane %v881, 1
    %v883 = vadd.f32 %v881, %v882
    %v884 = vsel %vm44, %v789, 0.0
    %v885 = vsel %vm44, %v790, 0.0
    %v886 = vadd.f32 %v884, %v885
    %v887 = vsel %vm44, %v791, 0.0
    %v888 = vadd.f32 %v886, %v887
    %v889 = vsel %vm44, %v792, 0.0
    %v890 = vadd.f32 %v888, %v889
    %v891 = vrot.slane %v890, 4
    %v892 = vadd.f32 %v890, %v891
    %v893 = vrot.slane %v892, 2
    %v894 = vadd.f32 %v892, %v893
    %v895 = vrot.slane %v894, 1
    %v896 = vadd.f32 %v894, %v895
    %v898 = vrot.slane %v286, 1
    %v899 = vrot.slane %v286, 2
    %v900 = vrot.slane %v286, 3
    %v901 = vrot.slane %v286, 4
    %v902 = vrot.slane %v286, 5
    %v903 = vrot.slane %v286, 6
    %v904 = vrot.slane %v286, 7
    %v913 = vmul.f32 %v549, %v286
    %v914 = vmul.f32 %v562, %v898
    %v915 = vmul.f32 %v575, %v899
    %v916 = vmul.f32 %v588, %v900
    %v917 = vmul.f32 %v601, %v901
    %v918 = vmul.f32 %v614, %v902
    %v919 = vmul.f32 %v627, %v903
    %v920 = vmul.f32 %v640, %v904
    %v929 = vrot.slane %v914, 7
    %vm930 = vcmask 1041409
    %v931 = vsel %vm930, %v929, %v913
    %v932 = vrot.slane %v915, 6
    %vm933 = vcmask 1042434
    %v934 = vsel %vm933, %v932, %v931
    %v935 = vrot.slane %v916, 5
    %vm936 = vcmask 1043459
    %v937 = vsel %vm936, %v935, %v934
    %v938 = vrot.slane %v917, 4
    %vm939 = vcmask 1044484
    %v940 = vsel %vm939, %v938, %v937
    %v941 = vrot.slane %v918, 3
    %vm942 = vcmask 1045509
    %v943 = vsel %vm942, %v941, %v940
    %v944 = vrot.slane %v919, 2
    %vm945 = vcmask 1046534
    %v946 = vsel %vm945, %v944, %v943
    %v947 = vrot.slane %v920, 1
    %vm948 = vcmask 1047559
    %v949 = vsel %vm948, %v947, %v946
    %v951 = vsel %vm130, %v949, 0.0
    %952 = vadd.xlane.f32.xlu0 %v951
    %v953 = vpop.xlane.xlu0 %952
    %v954 = vadd.f32 %v953, 1.0
    %v963 = vsel %vm930, %v818, %v805
    %v964 = vsel %vm933, %v831, %v963
    %v965 = vsel %vm936, %v844, %v964
    %v966 = vsel %vm939, %v857, %v965
    %v967 = vsel %vm942, %v870, %v966
    %v968 = vsel %vm945, %v883, %v967
    %v969 = vsel %vm948, %v896, %v968
    %971 = vst.msk [vmem:[#allocation2] sm:$0xff] %vm44, %v969
    %vm972 = vcmask 7168
    %973 = vst.msk [vmem:[%s10] sm:$0xff] %vm972, %v954
    // Predicated region
    $region38: #{tpu_custom_call.1} parent=1 // pred_check
      _
    $region39: #{tpu_custom_call.1} parent=1 // pred_check_branch
      %975 = sbr.rel (0) target = $region41
    $region40: #{tpu_custom_call.1} parent=1 // pred_region
      %s977 = ssub.s32 128, 128
      %978 = vsyncadd [#allocation3], %s977
      %s980 = sshll.u32 [#allocation2], 4
      %s981 = int_to_ptr.vmem [resolvable:$true] %s980
      %983 = dma.vmem_to_hbm [thread:$0]  %s981, 128, %s9, [#allocation3]
    $region41: #{tpu_custom_call.1} parent=1 // pred_fallthru
      _
    // Predicated region
    $region42: #{tpu_custom_call.1} parent=1 // pred_check
      _
    $region43: #{tpu_custom_call.1} parent=1 // pred_check_branch
      %985 = sbr.rel (0) target = $region45
    $region44: #{tpu_custom_call.1} parent=1 // pred_region
      _
    $region45: #{tpu_custom_call.1} parent=1 // pred_fallthru
      _
    // Predicated region
    $region46: #{tpu_custom_call.1} parent=1 // pred_check
      _
    $region47: #{tpu_custom_call.1} parent=1 // pred_check_branch
      %987 = sbr.rel (0) target = $region49
    $region48: #{tpu_custom_call.1} parent=1 // pred_region
      %988 = dma.done [#allocation3], 128
    $region49: #{tpu_custom_call.1} parent=1 // pred_fallthru
      _
    // Predicated region
    $region50: #{tpu_custom_call.1} parent=1 // pred_check
      _
    $region51: #{tpu_custom_call.1} parent=1 // pred_check_branch
      %990 = sbr.rel (0) target = $region53
    $region52: #{tpu_custom_call.1} parent=1 // pred_region
      _
    $region53: #{tpu_custom_call.1} parent=1 // pred_fallthru
      _
    %991 = vsyncpa [#allocation3], 1

</llo_original>
